<compile_context>
chip_gen: v7x
topology: tpu7x:2x2x1
jax: 0.10.0
libtpu: 0.0.40
codegen_flags: <defaults>
</compile_context>

<pallas_src>
import functools

import jax
import jax.numpy as jnp
from jax import lax
from jax.experimental import pallas as pl
from jax.experimental.pallas import tpu as pltpu


LANE = 128     # TPU lane width; feature dims are padded to this.
SUBLANE = 8    # sublane granularity for f32 tiles.


def _round_up(x, m):
    return (x + m - 1) // m * m


# ----------------------------------------------------------------------------
# Fused dense stack:  h = ReLU(...ReLU(ReLU(x @ W0 + b0) @ W1 + b1)... )
# Tiled over rows; all (small) weights stay resident in VMEM across the layer loop
# (constant index_map -> Pallas only DMAs them once).
# ----------------------------------------------------------------------------
def _dense_stack_kernel(*refs, num_layers):
    x_ref = refs[0]
    o_ref = refs[-1]
    h = x_ref[...]
    for l in range(num_layers):
        w = refs[1 + 2 * l][...]
        b = refs[2 + 2 * l][...]
        h = jnp.maximum(
            jnp.dot(h, w, preferred_element_type=jnp.float32) + b, 0.0)
    o_ref[...] = h.astype(o_ref.dtype)


def dense_stack(x, layers, *, tm=512):
    """x: (M, K0) f32; layers: [(w:(K_i,K_{i+1}), b:(1,K_{i+1}))]; ReLU after each."""
    M, K0 = x.shape
    n_out = layers[-1][0].shape[1]
    tm = min(tm, _round_up(M, SUBLANE))
    m_pad = _round_up(M, tm)
    if m_pad != M:
        x = jnp.pad(x, ((0, m_pad - M), (0, 0)))

    in_specs = [pl.BlockSpec((tm, K0), lambda i: (i, 0))]
    args = [x]
    for (w, b) in layers:
        # Constant index_map: loaded once, kept resident across all row tiles.
        in_specs.append(pl.BlockSpec(w.shape, lambda i: (0, 0)))
        in_specs.append(pl.BlockSpec(b.shape, lambda i: (0, 0)))
        args.extend([w, b])

    out = pl.pallas_call(
        functools.partial(_dense_stack_kernel, num_layers=len(layers)),
        out_shape=jax.ShapeDtypeStruct((m_pad, n_out), jnp.float32),
        grid=(m_pad // tm,),
        in_specs=in_specs,
        out_specs=pl.BlockSpec((tm, n_out), lambda i: (i, 0)),
        compiler_params=pltpu.CompilerParams(dimension_semantics=("parallel",)),
    )(*args)
    return out[:M] if m_pad != M else out


# ----------------------------------------------------------------------------
# Fused residual RNN stack (all BaseResRNNBlock layers in one kernel):
#   per layer l:  h_t = tanh(x_t @ Wih_l + b_l + h_{t-1} @ Whh_l),  h_{-1} = 0
#                 out_t = ReLU(h_t + x_t)
# Input is time-major (S_pad, B_pad, H_pad).  Grid = (batch_strips, time_chunks);
# per-layer hidden state is carried in VMEM scratch across time chunks (reset at
# chunk 0).  Layer l's chunk output is written into the output block in place and
# serves as layer l+1's input for the same chunk.
# ----------------------------------------------------------------------------
def _rnn_stack_kernel(*refs, num_layers, chunk, batch):
    x_ref = refs[0]
    o_ref = refs[1 + 3 * num_layers]
    xw_ref = refs[2 + 3 * num_layers]   # (chunk, batch, H) hoisted input projection
    st_ref = refs[3 + 3 * num_layers]   # (num_layers, batch, H) carried hidden state
    h_dim = x_ref.shape[-1]

    # First time chunk of this batch strip: reset every layer's hidden state.
    @pl.when(pl.program_id(1) == 0)
    def _():
        st_ref[...] = jnp.zeros_like(st_ref)

    for l in range(num_layers):
        wih = refs[1 + 3 * l][...]
        whh = refs[2 + 3 * l][...]
        b = refs[3 + 3 * l][...]
        src_ref = x_ref if l == 0 else o_ref   # layer input = previous layer's output

        # Hoisted input projection for the whole time chunk (one MXU matmul);
        # biases (b_ih + b_hh) pre-folded into b.
        xw = jnp.dot(src_ref[...].reshape(chunk * batch, h_dim), wih,
                     preferred_element_type=jnp.float32) + b
        xw_ref[...] = xw.reshape(chunk, batch, h_dim)

        def step(t, h, whh=whh, src_ref=src_ref):
            h_new = jnp.tanh(
                xw_ref[t]
                + jnp.dot(h, whh, preferred_element_type=jnp.float32))
            # Residual + ReLU; src_ref[t] is read before o_ref[t] is overwritten.
            o_ref[t] = jnp.maximum(h_new + src_ref[t], 0.0)
            return h_new

        # TODO(synk): on v5e, pltpu.matmul_push_rhs/matmul_acc_lhs could keep W_hh
        # resident in MXU weight registers across the serial loop; plain jnp.dot is
        # kept for portability.
        st_ref[l] = lax.fori_loop(0, chunk, step, st_ref[l],
                                  unroll=True if chunk <= 16 else 8)


def res_rnn_stack(x, rnn_params, *, time_chunk, batch_splits):
    """x: (S, B_pad, H_pad) f32 time-major; rnn_params: [(Wih^T, Whh^T, b_ih+b_hh)].

    Returns (S, B_pad, H_pad) f32.
    """
    S, Bp, H = x.shape
    L = len(rnn_params)
    bs = Bp // batch_splits
    assert bs * batch_splits == Bp and bs % SUBLANE == 0

    tc = min(time_chunk, S)
    s_pad = _round_up(S, tc)
    if s_pad != S:
        # Extra trailing timesteps compute garbage that is sliced off; they never
        # feed back into real timesteps (recurrence runs forward in time).
        x = jnp.pad(x, ((0, s_pad - S), (0, 0), (0, 0)))

    in_specs = [pl.BlockSpec((tc, bs, H), lambda bi, ti: (ti, bi, 0))]
    args = [x]
    for (wih, whh, b) in rnn_params:
        in_specs.append(pl.BlockSpec(wih.shape, lambda bi, ti: (0, 0)))
        in_specs.append(pl.BlockSpec(whh.shape, lambda bi, ti: (0, 0)))
        in_specs.append(pl.BlockSpec(b.shape, lambda bi, ti: (0, 0)))
        args.extend([wih, whh, b])

    out = pl.pallas_call(
        functools.partial(_rnn_stack_kernel, num_layers=L, chunk=tc, batch=bs),
        out_shape=jax.ShapeDtypeStruct((s_pad, Bp, H), jnp.float32),
        grid=(batch_splits, s_pad // tc),
        in_specs=in_specs,
        out_specs=pl.BlockSpec((tc, bs, H), lambda bi, ti: (ti, bi, 0)),
        scratch_shapes=[
            pltpu.VMEM((tc, bs, H), jnp.float32),   # hoisted x @ W_ih + b per chunk
            pltpu.VMEM((L, bs, H), jnp.float32),    # carried hidden state per layer
        ],
        compiler_params=pltpu.CompilerParams(
            dimension_semantics=("parallel", "arbitrary")),
    )(*args)
    return out[:S] if s_pad != S else out


# ----------------------------------------------------------------------------
# Tied output projection: logits = h @ emb^T, contracted on the shared E axis
# (emb passed as (V_pad, E_pad) -- no transposed copy materialized in HBM, no bias).
# ----------------------------------------------------------------------------
def _logits_kernel(h_ref, e_ref, o_ref):
    o_ref[...] = lax.dot_general(
        h_ref[...], e_ref[...],
        dimension_numbers=(((1,), (1,)), ((), ())),
        preferred_element_type=jnp.float32).astype(o_ref.dtype)


def tied_logits(h, emb_pad, vocab_size, *, tm=512, tn=512):
    M, E = h.shape
    Vp, E2 = emb_pad.shape
    assert E == E2
    tm = min(tm, _round_up(M, SUBLANE))
    tn = min(tn, _round_up(Vp, LANE))
    m_pad = _round_up(M, tm)
    v_pad = _round_up(Vp, tn)
    if m_pad != M:
        h = jnp.pad(h, ((0, m_pad - M), (0, 0)))
    e = emb_pad if v_pad == Vp else jnp.pad(emb_pad, ((0, v_pad - Vp), (0, 0)))

    out = pl.pallas_call(
        _logits_kernel,
        out_shape=jax.ShapeDtypeStruct((m_pad, v_pad), jnp.float32),
        grid=(m_pad // tm, v_pad // tn),
        in_specs=[
            pl.BlockSpec((tm, E), lambda i, j: (i, 0)),   # h tile resident across j
            pl.BlockSpec((tn, E), lambda i, j: (j, 0)),
        ],
        out_specs=pl.BlockSpec((tm, tn), lambda i, j: (i, j)),
        compiler_params=pltpu.CompilerParams(
            dimension_semantics=("parallel", "parallel")),
    )(h, e)
    return out[:M, :vocab_size]


# ----------------------------------------------------------------------------
# Parameter construction (deterministic, synthetic weights; padded to 128 lanes).
# Padding regions are zero, so padded math == unpadded math exactly.
# ----------------------------------------------------------------------------
def init_params(key, *, vocab_size, d_emb, d_hid, num_linear_layers,
                num_rnn_layers, pad_token_id):
    e_pad = _round_up(d_emb, LANE)
    h_pad = _round_up(d_hid, LANE)
    v_pad = _round_up(vocab_size, LANE)
    n_keys = 3 + 4 * num_rnn_layers + 2 * num_linear_layers
    keys = iter(jax.random.split(key, n_keys))

    def nrm(shape, scale=0.05):
        return scale * jax.random.normal(next(keys), shape, dtype=jnp.float32)

    def pad2(a, r, c):
        return jnp.pad(a, ((0, r - a.shape[0]), (0, c - a.shape[1])))

    emb = jax.random.normal(next(keys), (vocab_size, d_emb), dtype=jnp.float32)
    emb = emb.at[pad_token_id].set(0.0)   # padding_idx row zeroed, like torch Embedding

    params = {
        "vocab_size": vocab_size,
        "emb_pad": pad2(emb, v_pad, e_pad),                    # (V_pad, E_pad)
        # proj_emb_to_hid: Linear(E->H) stored as (E_pad, H_pad)
        "w_in": pad2(nrm((d_emb, d_hid)), e_pad, h_pad),
        "b_in": pad2(nrm((1, d_hid)), 1, h_pad),
        "rnn": [],
        "linear": [],
    }
    for _ in range(num_rnn_layers):
        wih = pad2(nrm((d_hid, d_hid)), h_pad, h_pad)          # W_ih^T
        whh = pad2(nrm((d_hid, d_hid)), h_pad, h_pad)          # W_hh^T
        b = pad2(nrm((1, d_hid)) + nrm((1, d_hid)), 1, h_pad)  # b_ih + b_hh pre-folded
        params["rnn"].append((wih, whh, b))
    for _ in range(num_linear_layers - 1):
        params["linear"].append((pad2(nrm((d_hid, d_hid)), h_pad, h_pad),
                                 pad2(nrm((1, d_hid)), 1, h_pad)))
    params["linear"].append((pad2(nrm((d_hid, d_emb)), h_pad, e_pad),
                             pad2(nrm((1, d_emb)), 1, e_pad)))
    return params


# ----------------------------------------------------------------------------
# Full forward pass (dropout layers are identity at inference).
# ----------------------------------------------------------------------------
def base_res_rnn_forward(params, tokens, *, rnn_time_chunk=None,
                         rnn_batch_splits=None):
    B, S = tokens.shape
    V = params["vocab_size"]
    emb_pad = params["emb_pad"]                           # (V_pad, E_pad)
    e_dim = emb_pad.shape[1]

    # Batch / time geometry for the recurrent stack: split the padded batch into
    # `ns` independent strips (multiple of 8 sublanes each) so the serial
    # recurrence can be sharded across TensorCores (v7x megacore) on the leading
    # "parallel" grid axis.
    ns = rnn_batch_splits if rnn_batch_splits is not None else (2 if B > SUBLANE else 1)
    bs = _round_up((B + ns - 1) // ns, SUBLANE)
    b_pad = ns * bs
    if rnn_time_chunk is None:
        # Target ~512 rows per chunk: amortizes per-grid-step overhead, keeps the
        # hoisted x@W_ih matmul MXU-friendly, bounds VMEM independent of S*B.
        rnn_time_chunk = max(1, 512 // bs)
    tc = min(rnn_time_chunk, S)

    # Embedding gather in TIME-MAJOR order: only an int32 token transpose, no
    # (B,S,H) f32 activation transpose before the RNN.
    tok_t = tokens.T                                      # (S, B)
    if b_pad != B:
        tok_t = jnp.pad(tok_t, ((0, 0), (0, b_pad - B)))  # pad rows use token id 0
    x = jnp.take(emb_pad, tok_t, axis=0)                  # (S, b_pad, E_pad) gather glue

    # proj_emb_to_hid + ReLU (padded batch rows are wasted work but sliced off later).
    h = dense_stack(x.reshape(S * b_pad, e_dim),
                    [(params["w_in"], params["b_in"])])   # (S*b_pad, H_pad)
    h_dim = h.shape[1]

    # Residual RNN stack: all layers fused, time-chunked, carried-state scratch.
    hr = res_rnn_stack(h.reshape(S, b_pad, h_dim), params["rnn"],
                       time_chunk=tc, batch_splits=ns)    # (S, b_pad, H_pad)

    # Back to batch-major for the row-wise tail (small (S,B,H) transpose).
    h = hr[:, :B, :].transpose(1, 0, 2).reshape(B * S, h_dim)

    # proj_hid_to_emb: all hidden linears + final H->E, ReLU after each, fused.
    h = dense_stack(h, params["linear"])                  # (B*S, E_pad)

    # Tied output projection (no bias, no ReLU).
    logits = tied_logits(h, emb_pad, V)                   # (B*S, V)
    return logits.reshape(B, S, V)


# ----------------------------------------------------------------------------
# Pure-JAX reference (same padded params; padding is zero so it equals the
# unpadded PyTorch eval-mode forward).
# ----------------------------------------------------------------------------
def reference_forward(params, tokens):
    B, S = tokens.shape
    V = params["vocab_size"]
    emb = params["emb_pad"]
    x = jnp.take(emb, tokens, axis=0)                                # (B,S,E_pad)
    h = jax.nn.relu(x @ params["w_in"] + params["b_in"])             # (B,S,H_pad)
    for (wih, whh, b) in params["rnn"]:
        def scan_step(hprev, xt, wih=wih, whh=whh, b=b):
            hnew = jnp.tanh(xt @ wih + hprev @ whh + b)
            return hnew, hnew
        _, hs = lax.scan(scan_step,
                         jnp.zeros((B, h.shape[-1]), jnp.float32),
                         jnp.swapaxes(h, 0, 1))
        h = jax.nn.relu(jnp.swapaxes(hs, 0, 1) + h)
    for (w, bb) in params["linear"]:
        h = jax.nn.relu(h @ w + bb)
    return jnp.einsum("bse,ve->bsv", h, emb)[:, :, :V]


def _check(params, tokens, tol, **fwd_kwargs):
    logits = base_res_rnn_forward(params, tokens, **fwd_kwargs)
    jax.block_until_ready(logits)
    B, S = tokens.shape
    assert logits.shape == (B, S, params["vocab_size"])
    assert logits.dtype == jnp.float32
    ref = reference_forward(params, tokens)
    jax.block_until_ready(ref)
    err = float(jnp.max(jnp.abs(logits - ref)))
    assert err < tol, f"max abs error vs reference: {err}"
    return err


if __name__ == "__main__":
    key = jax.random.PRNGKey(0)

    # --- Test 1: small config consistent with the module's constructor. ---------
    k_param, k_tok, k_param2, k_tok2 = jax.random.split(key, 4)
    params = init_params(
        k_param, vocab_size=128, d_emb=32, d_hid=64,
        num_linear_layers=2, num_rnn_layers=2, pad_token_id=0)
    tokens = jax.random.randint(k_tok, (2, 8), 0, 128, dtype=jnp.int32)
    _check(params, tokens, 1e-3)

    # --- Test 2: larger shapes to exercise batch splitting, multiple time chunks,
    #     time/batch/vocab padding branches, unroll=8 path and multi-tile logits. --
    params2 = init_params(
        k_param2, vocab_size=700, d_emb=48, d_hid=80,
        num_linear_layers=3, num_rnn_layers=2, pad_token_id=3)
    tokens2 = jax.random.randint(k_tok2, (12, 40), 0, 700, dtype=jnp.int32)
    _check(params2, tokens2, 2e-3, rnn_time_chunk=24)

    print("KERNEL_OK")
</pallas_src>

<mosaic_0001>
module attributes {stable_mosaic.version = 11 : i64} {
  func.func @_dense_stack_kernel(%arg0: i32, %arg1: memref<64x128xf32, #tpu.memory_space<vmem>>, %arg2: memref<128x128xf32, #tpu.memory_space<vmem>>, %arg3: memref<1x128xf32, #tpu.memory_space<vmem>>, %arg4: memref<64x128xf32, #tpu.memory_space<vmem>>) attributes {dimension_semantics = [#tpu.dimension_semantics<parallel>], iteration_bounds = array<i64: 1>, scalar_prefetch = 0 : i64, scratch_operands = 0 : i64, tpu.core_type = #tpu.core_type<tc>, window_params = [{transform_indices = @transform_0, window_bounds = array<i64: 64, 128>}, {pipeline_mode = #tpu.pipeline_mode<synchronous>, transform_indices = @transform_1, window_bounds = array<i64: 128, 128>}, {pipeline_mode = #tpu.pipeline_mode<synchronous>, transform_indices = @transform_2, window_bounds = array<i64: 1, 128>}, {transform_indices = @transform_3, window_bounds = array<i64: 64, 128>}]} {
    %c0 = arith.constant 0 : index
    %c0_0 = arith.constant 0 : index
    %0 = vector.load %arg1[%c0, %c0_0] : memref<64x128xf32, #tpu.memory_space<vmem>>, vector<64x128xf32>
    %c0_1 = arith.constant 0 : index
    %c0_2 = arith.constant 0 : index
    %1 = vector.load %arg2[%c0_1, %c0_2] : memref<128x128xf32, #tpu.memory_space<vmem>>, vector<128x128xf32>
    %c0_3 = arith.constant 0 : index
    %c0_4 = arith.constant 0 : index
    %2 = vector.load %arg3[%c0_3, %c0_4] : memref<1x128xf32, #tpu.memory_space<vmem>>, vector<1x128xf32>
    %cst = arith.constant dense<0.000000e+00> : vector<64x128xf32>
    %3 = tpu.matmul %0, %1, %cst {dimension_numbers = #tpu.dot_dimension_numbers<[1], [0], [0], [1], [0, 0, 1, 1], [], []>} : vector<64x128xf32>, vector<128x128xf32>, vector<64x128xf32> -> vector<64x128xf32>
    %4 = vector.broadcast %2 : vector<1x128xf32> to vector<64x128xf32>
    %5 = arith.addf %3, %4 : vector<64x128xf32>
    %cst_5 = arith.constant 0.000000e+00 : f32
    %6 = vector.broadcast %cst_5 : f32 to vector<64x128xf32>
    %7 = arith.maximumf %5, %6 : vector<64x128xf32>
    %c0_6 = arith.constant 0 : index
    %c0_7 = arith.constant 0 : index
    %8 = vector.load %arg4[%c0_6, %c0_7] : memref<64x128xf32, #tpu.memory_space<vmem>>, vector<64x128xf32>
    tpu.vector_store %arg4[%c0_6, %c0_7], %7 {strides = array<i32>} : memref<64x128xf32, #tpu.memory_space<vmem>>, vector<64x128xf32>,
    return
  }
  func.func @transform_0(%arg0: i32) -> (i32, i32) {
    %c0_i32 = arith.constant 0 : i32
    %c0_i32_0 = arith.constant 0 : i32
    return %arg0, %c0_i32 : i32, i32
  }
  func.func @transform_1(%arg0: i32) -> (i32, i32) {
    %c0_i32 = arith.constant 0 : i32
    %c0_i32_0 = arith.constant 0 : i32
    %c0_i32_1 = arith.constant 0 : i32
    return %c0_i32, %c0_i32_0 : i32, i32
  }
  func.func @transform_2(%arg0: i32) -> (i32, i32) {
    %c0_i32 = arith.constant 0 : i32
    %c0_i32_0 = arith.constant 0 : i32
    %c0_i32_1 = arith.constant 0 : i32
    return %c0_i32, %c0_i32_0 : i32, i32
  }
  func.func @transform_3(%arg0: i32) -> (i32, i32) {
    %c0_i32 = arith.constant 0 : i32
    %c0_i32_0 = arith.constant 0 : i32
    return %arg0, %c0_i32 : i32, i32
  }
}

</mosaic_0001>

<llo_original>
// kernel: tpu_custom_call.1
$region0: #{tpu_custom_call.1}
  #allocation0 [shape = 'u32[]', space=smem, size = 0x4, offset = 0x4, fixed_abs, tag = 'smem constant byte address 0x4 - core index']
  #allocation1 [shape = 'u32[144,128]{1,0:T(1,128)}', space=vmem, size = 0x12000, scoped, tag = 'internal scratch']
  %s0 = inlined_call_operand.hbm [shape: f32[64,128], index: 0, kind: input, shape index: {}]
  %s1 = inlined_call_operand.hbm [shape: f32[128,128], index: 1, kind: input, shape index: {}]
  %s2 = inlined_call_operand.vmem [shape: f32[1,128], index: 2, kind: input, shape index: {}]
  %s3 = inlined_call_operand.hbm [shape: f32[64,128], index: 3, kind: output, shape index: {}]
  %s4 = sld [smem:[#allocation0]]
  $region30: #{tpu_custom_call.1} parent=0
    _
  %s6 = ssub.s32 1, %s4
  %s7 = scalar_select 0, %s6, %s4
  $region1: #{tpu_custom_call.1} parent=0
    #allocation2 [shape = 'u8[32768]{0}', space=vmem, size = 0x8000, scoped, tag = 'input window, operand 0, single buffered']
    #allocation3 [shape = 's32[1]{0}', space=sflag, size = 0x4, scoped, tag = 'scoped memory for tpu_custom_call.1']
    #allocation4 [shape = 's32[1]{0}', space=sflag, size = 0x4, scoped, tag = 'scoped memory for tpu_custom_call.1']
    #allocation5 [shape = 'u8[65536]{0}', space=vmem, size = 0x10000, scoped, tag = 'input window, operand 1, single buffered']
    #allocation6 [shape = 's32[1]{0}', space=sflag, size = 0x4, scoped, tag = 'scoped memory for tpu_custom_call.1']
    #allocation7 [shape = 'u8[32768]{0}', space=vmem, size = 0x8000, scoped, tag = 'output window, operand 0, single buffered']
    %8 = vsyncpa [#allocation3], 0
    %9 = vsyncpa [#allocation6], 0
    %10 = vsyncpa [#allocation4], 0
    // Predicated region
    $region2: #{tpu_custom_call.1} parent=1 // pred_check
      _
    $region3: #{tpu_custom_call.1} parent=1 // pred_check_branch
      %12 = sbr.rel (0) target = $region5
    $region4: #{tpu_custom_call.1} parent=1 // pred_region
      %s14 = ssub.s32 1024, 1024
      %15 = vsyncadd [#allocation3], %s14
      %s16 = sshll.u32 [#allocation2], 4
      %s17 = int_to_ptr.vmem [resolvable:$true] %s16
      %22 = dma.hbm_to_vmem [thread:$0]  %s0, 1024, %s17, [#allocation3], 128, 128, 8
    $region5: #{tpu_custom_call.1} parent=1 // pred_fallthru
      _
    // Predicated region
    $region6: #{tpu_custom_call.1} parent=1 // pred_check
      _
    $region7: #{tpu_custom_call.1} parent=1 // pred_check_branch
      %24 = sbr.rel (0) target = $region9
    $region8: #{tpu_custom_call.1} parent=1 // pred_region
      %s26 = ssub.s32 2048, 2048
      %27 = vsyncadd [#allocation6], %s26
      %s28 = sshll.u32 [#allocation5], 4
      %s29 = int_to_ptr.vmem [resolvable:$true] %s28
      %34 = dma.hbm_to_vmem [thread:$0]  %s1, 2048, %s29, [#allocation6], 128, 128, 8
    $region9: #{tpu_custom_call.1} parent=1 // pred_fallthru
      _
    // Predicated region
    $region10: #{tpu_custom_call.1} parent=1 // pred_check
      _
    $region11: #{tpu_custom_call.1} parent=1 // pred_check_branch
      %36 = sbr.rel (0) target = $region13
    $region12: #{tpu_custom_call.1} parent=1 // pred_region
      _
    $region13: #{tpu_custom_call.1} parent=1 // pred_fallthru
      _
    // Predicated region
    $region14: #{tpu_custom_call.1} parent=1 // pred_check
      _
    $region15: #{tpu_custom_call.1} parent=1 // pred_check_branch
      %38 = sbr.rel (0) target = $region17
    $region16: #{tpu_custom_call.1} parent=1 // pred_region
      %39 = dma.done [#allocation3], 1024
    $region17: #{tpu_custom_call.1} parent=1 // pred_fallthru
      _
    // Predicated region
    $region18: #{tpu_custom_call.1} parent=1 // pred_check
      _
    $region19: #{tpu_custom_call.1} parent=1 // pred_check_branch
      %41 = sbr.rel (0) target = $region21
    $region20: #{tpu_custom_call.1} parent=1 // pred_region
      %42 = dma.done [#allocation6], 2048
    $region21: #{tpu_custom_call.1} parent=1 // pred_fallthru
      _
    %v43 = vld [vmem:[#allocation2] sm:$0xff]
    %v44 = vld [vmem:[#allocation2 + $0x8] sm:$0xff]
    %v45 = vld [vmem:[#allocation2 + $0x10] sm:$0xff]
    %v46 = vld [vmem:[#allocation2 + $0x18] sm:$0xff]
    %v47 = vld [vmem:[#allocation2 + $0x20] sm:$0xff]
    %v48 = vld [vmem:[#allocation2 + $0x28] sm:$0xff]
    %v49 = vld [vmem:[#allocation2 + $0x30] sm:$0xff]
    %v50 = vld [vmem:[#allocation2 + $0x38] sm:$0xff]
    %v51 = vld [vmem:[#allocation5] sm:$0xff]
    %v52 = vld [vmem:[#allocation5 + $0x8] sm:$0xff]
    %v53 = vld [vmem:[#allocation5 + $0x10] sm:$0xff]
    %v54 = vld [vmem:[#allocation5 + $0x18] sm:$0xff]
    %v55 = vld [vmem:[#allocation5 + $0x20] sm:$0xff]
    %v56 = vld [vmem:[#allocation5 + $0x28] sm:$0xff]
    %v57 = vld [vmem:[#allocation5 + $0x30] sm:$0xff]
    %v58 = vld [vmem:[#allocation5 + $0x38] sm:$0xff]
    %v59 = vld [vmem:[#allocation5 + $0x40] sm:$0xff]
    %v60 = vld [vmem:[#allocation5 + $0x48] sm:$0xff]
    %v61 = vld [vmem:[#allocation5 + $0x50] sm:$0xff]
    %v62 = vld [vmem:[#allocation5 + $0x58] sm:$0xff]
    %v63 = vld [vmem:[#allocation5 + $0x60] sm:$0xff]
    %v64 = vld [vmem:[#allocation5 + $0x68] sm:$0xff]
    %v65 = vld [vmem:[#allocation5 + $0x70] sm:$0xff]
    %v66 = vld [vmem:[#allocation5 + $0x78] sm:$0xff]
    %v67 = vld [vmem:[%s2] sm:$0x1]
    %v69 = vlaneseq
    %v70 = vshrl.u32 %v69, 7
    %v71 = vsub.s32 0, %v70
    %v72 = vrot.slane %v67, %v71
    %74 = vmatprep.subr.mxu0 0.0
    %75 = vmatpush1.msra.mxu0 %v51
    %76 = vmatprep.subr.mxu0 0.0
    %77 = vmatpush1.msra.mxu0 %v52
    %78 = vmatprep.subr.mxu0 0.0
    %79 = vmatpush1.msra.mxu0 %v53
    %80 = vmatprep.subr.mxu0 0.0
    %81 = vmatpush1.msra.mxu0 %v54
    %82 = vmatprep.subr.mxu0 0.0
    %83 = vmatpush1.msra.mxu0 %v55
    %84 = vmatprep.subr.mxu0 0.0
    %85 = vmatpush1.msra.mxu0 %v56
    %86 = vmatprep.subr.mxu0 0.0
    %87 = vmatpush1.msra.mxu0 %v57
    %88 = vmatprep.subr.mxu0 0.0
    %89 = vmatpush1.msra.mxu0 %v58
    %90 = vmatprep.subr.mxu0 0.0
    %91 = vmatpush1.msra.mxu0 %v59
    %92 = vmatprep.subr.mxu0 0.0
    %93 = vmatpush1.msra.mxu0 %v60
    %94 = vmatprep.subr.mxu0 0.0
    %95 = vmatpush1.msra.mxu0 %v61
    %96 = vmatprep.subr.mxu0 0.0
    %97 = vmatpush1.msra.mxu0 %v62
    %98 = vmatprep.subr.mxu0 0.0
    %99 = vmatpush1.msra.mxu0 %v63
    %100 = vmatprep.subr.mxu0 0.0
    %101 = vmatpush1.msra.mxu0 %v64
    %102 = vmatprep.subr.mxu0 0.0
    %103 = vmatpush1.msra.mxu0 %v65
    %104 = vmatprep.subr.mxu0 0.0
    %105 = vmatpush1.msra.mxu0 %v66
    %106 = vmatprep.subr.mxu0 0.0
    %107 = vmatpush1.msra.mxu0 0.0
    %108 = vmatprep.subr.mxu0 0.0
    %109 = vmatpush1.msra.mxu0 0.0
    %110 = vmatprep.subr.mxu0 0.0
    %111 = vmatpush1.msra.mxu0 0.0
    %112 = vmatprep.subr.mxu0 0.0
    %113 = vmatpush1.msra.mxu0 0.0
    %114 = vmatprep.subr.mxu0 0.0
    %115 = vmatpush1.msra.mxu0 0.0
    %116 = vmatprep.subr.mxu0 0.0
    %117 = vmatpush1.msra.mxu0 0.0
    %118 = vmatprep.subr.mxu0 0.0
    %119 = vmatpush1.msra.mxu0 0.0
    %120 = vmatprep.subr.mxu0 0.0
    %121 = vmatpush1.msra.mxu0 0.0
    %122 = vmatprep.subr.mxu0 0.0
    %123 = vmatpush1.msra.mxu0 0.0
    %124 = vmatprep.subr.mxu0 0.0
    %125 = vmatpush1.msra.mxu0 0.0
    %126 = vmatprep.subr.mxu0 0.0
    %127 = vmatpush1.msra.mxu0 0.0
    %128 = vmatprep.subr.mxu0 0.0
    %129 = vmatpush1.msra.mxu0 0.0
    %130 = vmatprep.subr.mxu0 0.0
    %131 = vmatpush1.msra.mxu0 0.0
    %132 = vmatprep.subr.mxu0 0.0
    %133 = vmatpush1.msra.mxu0 0.0
    %134 = vmatprep.subr.mxu0 0.0
    %135 = vmatpush1.msra.mxu0 0.0
    %136 = vmatprep.subr.mxu0 0.0
    %137 = vmatpush1.msra.mxu0 0.0
    %138 = vmatprep.mubr.f32.mxu0 0.0
    %139 = vmatmul.mubr.f32.gmra.mrb[0].mxu0 %v43
    %v140 = vpop.f32.mrb[0].mxu0
    %v141 = vadd.f32 %v72, %v140
    %v142 = vpop.f32.mrb[0].mxu0
    %143 = vmatprep.mubr.f32.mxu0 0.0
    %144 = vmatmul.mubr.f32.gmra.mrb[0].mxu0 %v44
    %v145 = vpop.f32.mrb[0].mxu0
    %v146 = vadd.f32 %v72, %v145
    %v147 = vpop.f32.mrb[0].mxu0
    %148 = vmatprep.mubr.f32.mxu0 0.0
    %149 = vmatmul.mubr.f32.gmra.mrb[0].mxu0 %v45
    %v150 = vpop.f32.mrb[0].mxu0
    %v151 = vadd.f32 %v72, %v150
    %v152 = vpop.f32.mrb[0].mxu0
    %153 = vmatprep.mubr.f32.mxu0 0.0
    %154 = vmatmul.mubr.f32.gmra.mrb[0].mxu0 %v46
    %v155 = vpop.f32.mrb[0].mxu0
    %v156 = vadd.f32 %v72, %v155
    %v157 = vpop.f32.mrb[0].mxu0
    %158 = vmatprep.mubr.f32.mxu0 0.0
    %159 = vmatmul.mubr.f32.gmra.mrb[0].mxu0 %v47
    %v160 = vpop.f32.mrb[0].mxu0
    %v161 = vadd.f32 %v72, %v160
    %v162 = vpop.f32.mrb[0].mxu0
    %163 = vmatprep.mubr.f32.mxu0 0.0
    %164 = vmatmul.mubr.f32.gmra.mrb[0].mxu0 %v48
    %v165 = vpop.f32.mrb[0].mxu0
    %v166 = vadd.f32 %v72, %v165
    %v167 = vpop.f32.mrb[0].mxu0
    %168 = vmatprep.mubr.f32.mxu0 0.0
    %169 = vmatmul.mubr.f32.gmra.mrb[0].mxu0 %v49
    %v170 = vpop.f32.mrb[0].mxu0
    %v171 = vadd.f32 %v72, %v170
    %v172 = vpop.f32.mrb[0].mxu0
    %173 = vmatprep.mubr.f32.mxu0 0.0
    %174 = vmatmul.mubr.f32.gmra.mrb[0].mxu0 %v50
    %v175 = vpop.f32.mrb[0].mxu0
    %v176 = vadd.f32 %v72, %v175
    %v177 = vpop.f32.mrb[0].mxu0
    %178 = vdwg.mxu0
    %v179 = vmax.f32 %v141, 0.0
    %v180 = vmax.f32 %v146, 0.0
    %v181 = vmax.f32 %v151, 0.0
    %v182 = vmax.f32 %v156, 0.0
    %v183 = vmax.f32 %v161, 0.0
    %v184 = vmax.f32 %v166, 0.0
    %v185 = vmax.f32 %v171, 0.0
    %v186 = vmax.f32 %v176, 0.0
    %187 = vst [vmem:[#allocation7] sm:$0xff] %v179
    %188 = vst [vmem:[#allocation7 + $0x8] sm:$0xff] %v180
    %189 = vst [vmem:[#allocation7 + $0x10] sm:$0xff] %v181
    %190 = vst [vmem:[#allocation7 + $0x18] sm:$0xff] %v182
    %191 = vst [vmem:[#allocation7 + $0x20] sm:$0xff] %v183
    %192 = vst [vmem:[#allocation7 + $0x28] sm:$0xff] %v184
    %193 = vst [vmem:[#allocation7 + $0x30] sm:$0xff] %v185
    %194 = vst [vmem:[#allocation7 + $0x38] sm:$0xff] %v186
    // Predicated region
    $region22: #{tpu_custom_call.1} parent=1 // pred_check
      _
    $region23: #{tpu_custom_call.1} parent=1 // pred_check_branch
      %196 = sbr.rel (0) target = $region25
    $region24: #{tpu_custom_call.1} parent=1 // pred_region
      %s198 = ssub.s32 1024, 1024
      %199 = vsyncadd [#allocation4], %s198
      %s200 = sshll.u32 [#allocation7], 4
      %s201 = int_to_ptr.vmem [resolvable:$true] %s200
      %206 = dma.vmem_to_hbm [thread:$0]  %s201, 1024, %s3, [#allocation4], 128, 128, 8
    $region25: #{tpu_custom_call.1} parent=1 // pred_fallthru
      _
    // Predicated region
    $region26: #{tpu_custom_call.1} parent=1 // pred_check
      _
    $region27: #{tpu_custom_call.1} parent=1 // pred_check_branch
      %208 = sbr.rel (0) target = $region29
    $region28: #{tpu_custom_call.1} parent=1 // pred_region
      %209 = dma.done [#allocation4], 1024
    $region29: #{tpu_custom_call.1} parent=1 // pred_fallthru
      _
    %210 = vsyncpa [#allocation3], 1
    %211 = vsyncpa [#allocation6], 1
    %212 = vsyncpa [#allocation4], 1

</llo_original>
